<compile_context>
chip_gen: v6e
topology: v6e:2x2x1
jax: 0.10.0
libtpu: 0.0.40
codegen_flags: <defaults>
</compile_context>

<pallas_src>
import functools

import jax
import jax.numpy as jnp
from jax.experimental import pallas as pl
from jax.experimental.pallas import tpu as pltpu

LANE = 128
SUBLANE = 8


def _round_up(x, m):
    return (x + m - 1) // m * m


def _cdiv(a, b):
    return (a + b - 1) // b


def autofusion_kernel(z_ref, w1_ref, b1_ref, w2_ref, b2_ref,
                      w3_ref, b3_ref, w4_ref, b4_ref,
                      zc_ref, loss_ref, *, batch, tm, compute_dtype, needs_mask):
    # z tile in f32 (needed for the MSE diff); matmul inputs in compute_dtype.
    z32 = z_ref[...].astype(jnp.float32)                    # (tm, F_pad)
    zin = z32.astype(compute_dtype)

    # fuse_in: Linear -> Tanh -> Linear -> ReLU  (accumulate in f32 on the MXU)
    h1 = jnp.tanh(
        jnp.dot(zin, w1_ref[...], preferred_element_type=jnp.float32)
        + b1_ref[...]
    )
    zc = jnp.maximum(
        jnp.dot(h1.astype(compute_dtype), w2_ref[...],
                preferred_element_type=jnp.float32)
        + b2_ref[...],
        0.0,
    )

    # fuse_out: Linear -> ReLU -> Linear
    h2 = jnp.maximum(
        jnp.dot(zc.astype(compute_dtype), w3_ref[...],
                preferred_element_type=jnp.float32)
        + b3_ref[...],
        0.0,
    )
    recon = (
        jnp.dot(h2.astype(compute_dtype), w4_ref[...],
                preferred_element_type=jnp.float32)
        + b4_ref[...]
    )

    # Per-tile partial sum of squared error, reduced over the sublane (batch)
    # axis only -> lane-dense (1, F_pad) slab; wrapper does the final sum.
    # Feature-padding columns are exactly zero in both recon and z (zero-padded
    # weights/biases/inputs).  Batch-padding rows are masked, but the mask path
    # is only emitted when the batch is not a multiple of the tile.
    diff = recon - z32
    sq = diff * diff
    if needs_mask:
        row = pl.program_id(0) * tm + jax.lax.broadcasted_iota(
            jnp.int32, (tm, 1), 0)
        sq = jnp.where(row < batch, sq, 0.0)

    zc_ref[...] = zc.astype(zc_ref.dtype)
    loss_ref[...] = jnp.sum(sq, axis=0, keepdims=True)[None]   # (1, 1, F_pad)


def autofusion_forward(z, params, *, tile_m=512, compute_dtype=jnp.bfloat16):
    """AutoFusion forward. Returns dict(z=compressed_z, loss=scalar)."""
    w1, b1, w2, b2, w3, b3, w4, b4 = params
    batch, feat = z.shape
    hidden = w1.shape[1]
    latent = w2.shape[1]

    # Lane-dense padded widths (zero padding keeps the math exact).
    f_pad = _round_up(feat, LANE)
    h_pad = _round_up(hidden, LANE)
    l_pad = _round_up(latent, LANE)

    # Batch tile: multiple of 16 rows when matmul inputs are sub-32-bit (keeps
    # the bf16 casts fully packed), else 8 sublanes; capped by tile_m.
    w_itemsize = jnp.dtype(compute_dtype).itemsize
    row_mult = 16 if w_itemsize < 4 else SUBLANE
    tm = min(_round_up(tile_m, row_mult), _round_up(batch, row_mult))
    # Prefer >=2 grid tiles so a megacore chip (v7x) can shard the parallel
    # batch axis across both TensorCores.
    if _round_up(batch, row_mult) // tm < 2 and batch > row_mult:
        tm = _round_up(_cdiv(batch, 2), row_mult)
    b_pad = _round_up(batch, tm)
    num_tiles = b_pad // tm
    needs_mask = (b_pad != batch)

    def pad2(a, rows, cols, dtype):
        a = a.astype(jnp.float32)
        a = jnp.pad(a, ((0, rows - a.shape[0]), (0, cols - a.shape[1])))
        return a.astype(dtype)

    z_p = pad2(z, b_pad, f_pad, jnp.float32)
    w1_p = pad2(w1, f_pad, h_pad, compute_dtype)
    b1_p = pad2(b1, 1, h_pad, jnp.float32)
    w2_p = pad2(w2, h_pad, l_pad, compute_dtype)
    b2_p = pad2(b2, 1, l_pad, jnp.float32)
    w3_p = pad2(w3, l_pad, h_pad, compute_dtype)
    b3_p = pad2(b3, 1, h_pad, jnp.float32)
    w4_p = pad2(w4, h_pad, f_pad, compute_dtype)
    b4_p = pad2(b4, 1, f_pad, jnp.float32)

    def resident(shape):
        # Constant index_map -> block never changes -> DMA'd once.  Single-
        # buffered (Buffered(1)): double-buffering a never-changing block only
        # doubles its VMEM footprint without hiding any DMA.
        return pl.BlockSpec(shape, lambda i: (0, 0),
                            pipeline_mode=pl.Buffered(1))

    in_specs = [
        pl.BlockSpec((tm, f_pad), lambda i: (i, 0)),   # z tile (pipelined)
        resident((f_pad, h_pad)), resident((1, h_pad)),
        resident((h_pad, l_pad)), resident((1, l_pad)),
        resident((l_pad, h_pad)), resident((1, h_pad)),
        resident((h_pad, f_pad)), resident((1, f_pad)),
    ]
    out_specs = (
        pl.BlockSpec((tm, l_pad), lambda i: (i, 0)),       # compressed z tile
        pl.BlockSpec((1, 1, f_pad), lambda i: (i, 0, 0)),  # per-tile loss slab
    )

    # VMEM budget derived from actual buffer sizes (single-buffered weights,
    # double-buffered streamed tiles, headroom for activations/intermediates),
    # capped at ~3/4 of physical VMEM so the same kernel fits v5e/v6e (128 MiB)
    # and v7x (64 MiB).
    weight_bytes = (w1_p.size + w2_p.size + w3_p.size + w4_p.size) * w_itemsize
    bias_bytes = (b1_p.size + b2_p.size + b3_p.size + b4_p.size) * 4
    io_bytes = 2 * (tm * f_pad + tm * l_pad + f_pad) * 4
    act_bytes = tm * (2 * h_pad + f_pad + l_pad) * 4
    budget = weight_bytes + bias_bytes + io_bytes + act_bytes + (4 << 20)
    try:
        vmem_cap = int(pltpu.get_tpu_info().vmem_capacity_bytes) * 3 // 4
    except Exception:
        vmem_cap = 48 << 20     # conservative: fits every TPU generation
    vmem_limit = int(min(max(budget, 32 << 20), max(vmem_cap, 32 << 20)))

    # Advisory cost estimate from the true (unpadded) dims.
    w_true = feat * hidden + hidden * latent + latent * hidden + hidden * feat
    flops = 2 * batch * w_true
    bytes_accessed = (
        batch * feat * 4                       # z read
        + w_true * w_itemsize                  # weights (read once)
        + (2 * hidden + latent + feat) * 4     # biases
        + batch * latent * 4                   # zc write
        + num_tiles * f_pad * 4                # loss partials
    )

    kernel = functools.partial(
        autofusion_kernel, batch=batch, tm=tm,
        compute_dtype=compute_dtype, needs_mask=needs_mask)

    zc_pad, loss_parts = pl.pallas_call(
        kernel,
        out_shape=(
            jax.ShapeDtypeStruct((b_pad, l_pad), jnp.float32),
            jax.ShapeDtypeStruct((num_tiles, 1, f_pad), jnp.float32),
        ),
        grid_spec=pltpu.PrefetchScalarGridSpec(
            num_scalar_prefetch=0,
            grid=(num_tiles,),
            in_specs=in_specs,
            out_specs=out_specs,
        ),
        compiler_params=pltpu.CompilerParams(
            dimension_semantics=("parallel",),   # megacore-shardable batch axis
            vmem_limit_bytes=vmem_limit,
        ),
        cost_estimate=pl.CostEstimate(
            flops=int(flops),
            transcendentals=int(batch * hidden),
            bytes_accessed=int(bytes_accessed),
        ),
    )(z_p, w1_p, b1_p, w2_p, b2_p, w3_p, b3_p, w4_p, b4_p)

    zc = zc_pad[:batch, :latent]
    loss = jnp.sum(loss_parts) / jnp.float32(batch * feat)
    return {"z": zc, "loss": loss}


def init_params(key, input_features, latent_dim):
    """PyTorch-style init: U(-1/sqrt(fan_in), 1/sqrt(fan_in)).
    Weights generated directly as (in, out); biases as (1, out)."""
    half = input_features // 2
    dims = [
        (input_features, half),   # fuse_in Linear 0
        (half, latent_dim),       # fuse_in Linear 2
        (latent_dim, half),       # fuse_out Linear 0
        (half, input_features),   # fuse_out Linear 2
    ]
    params = []
    for fan_in, fan_out in dims:
        key, kw, kb = jax.random.split(key, 3)
        bound = 1.0 / jnp.sqrt(jnp.float32(fan_in))
        w = jax.random.uniform(kw, (fan_in, fan_out), jnp.float32, -bound, bound)
        b = jax.random.uniform(kb, (1, fan_out), jnp.float32, -bound, bound)
        params.extend([w, b])
    return tuple(params)


def reference_forward(z, params):
    """Plain-JAX reference for correctness checking."""
    w1, b1, w2, b2, w3, b3, w4, b4 = params
    h1 = jnp.tanh(z @ w1 + b1)
    zc = jnp.maximum(h1 @ w2 + b2, 0.0)
    h2 = jnp.maximum(zc @ w3 + b3, 0.0)
    recon = h2 @ w4 + b4
    loss = jnp.mean((recon - z) ** 2)
    return {"z": zc, "loss": loss}


if __name__ == "__main__":
    key = jax.random.PRNGKey(0)
    batch = 40                 # not a multiple of the tile -> exercises row masking
    input_features = 32
    latent_dim = 16

    key, kz, kp = jax.random.split(key, 3)
    z = jax.random.normal(kz, (batch, input_features), jnp.float32)
    params = init_params(kp, input_features, latent_dim)

    ref = reference_forward(z, params)

    # f32 matmul-input path, checked tightly against the reference.
    out = autofusion_forward(z, params, compute_dtype=jnp.float32)
    jax.block_until_ready(out)
    assert out["z"].shape == (batch, latent_dim)
    assert jnp.allclose(out["z"], ref["z"], atol=1e-4, rtol=1e-4)
    assert jnp.allclose(out["loss"], ref["loss"], atol=1e-4, rtol=1e-4)

    # Default bf16 matmul-input path (full-rate MXU on v5e/v6e/v7x, half the
    # resident weight VMEM), loose tolerance.
    out_bf16 = autofusion_forward(z, params)
    jax.block_until_ready(out_bf16)
    assert out_bf16["z"].shape == (batch, latent_dim)
    assert jnp.isfinite(out_bf16["loss"])
    assert jnp.allclose(out_bf16["z"], ref["z"], atol=0.1, rtol=0.1)
    assert jnp.allclose(out_bf16["loss"], ref["loss"], atol=0.1, rtol=0.1)

    print("KERNEL_OK")
</pallas_src>

<mosaic_0001>
module attributes {stable_mosaic.version = 11 : i64} {
  func.func @autofusion_kernel(%arg0: i32, %arg1: memref<24x128xf32, #tpu.memory_space<vmem>>, %arg2: memref<128x128xf32, #tpu.memory_space<vmem>>, %arg3: memref<1x128xf32, #tpu.memory_space<vmem>>, %arg4: memref<128x128xf32, #tpu.memory_space<vmem>>, %arg5: memref<1x128xf32, #tpu.memory_space<vmem>>, %arg6: memref<128x128xf32, #tpu.memory_space<vmem>>, %arg7: memref<1x128xf32, #tpu.memory_space<vmem>>, %arg8: memref<128x128xf32, #tpu.memory_space<vmem>>, %arg9: memref<1x128xf32, #tpu.memory_space<vmem>>, %arg10: memref<24x128xf32, #tpu.memory_space<vmem>>, %arg11: memref<1x1x128xf32, #tpu.memory_space<vmem>>) attributes {dimension_semantics = [#tpu.dimension_semantics<parallel>], iteration_bounds = array<i64: 2>, scalar_prefetch = 0 : i64, scratch_operands = 0 : i64, tpu.core_type = #tpu.core_type<tc>, window_params = [{transform_indices = @transform_0, window_bounds = array<i64: 24, 128>}, {pipeline_mode = #tpu.pipeline_mode<synchronous>, transform_indices = @transform_1, window_bounds = array<i64: 128, 128>}, {pipeline_mode = #tpu.pipeline_mode<synchronous>, transform_indices = @transform_2, window_bounds = array<i64: 1, 128>}, {pipeline_mode = #tpu.pipeline_mode<synchronous>, transform_indices = @transform_3, window_bounds = array<i64: 128, 128>}, {pipeline_mode = #tpu.pipeline_mode<synchronous>, transform_indices = @transform_4, window_bounds = array<i64: 1, 128>}, {pipeline_mode = #tpu.pipeline_mode<synchronous>, transform_indices = @transform_5, window_bounds = array<i64: 128, 128>}, {pipeline_mode = #tpu.pipeline_mode<synchronous>, transform_indices = @transform_6, window_bounds = array<i64: 1, 128>}, {pipeline_mode = #tpu.pipeline_mode<synchronous>, transform_indices = @transform_7, window_bounds = array<i64: 128, 128>}, {pipeline_mode = #tpu.pipeline_mode<synchronous>, transform_indices = @transform_8, window_bounds = array<i64: 1, 128>}, {transform_indices = @transform_9, window_bounds = array<i64: 24, 128>}, {transform_indices = @transform_10, window_bounds = array<i64: 1, 1, 128>}]} {
    %c0 = arith.constant 0 : index
    %c0_0 = arith.constant 0 : index
    %0 = vector.load %arg1[%c0, %c0_0] : memref<24x128xf32, #tpu.memory_space<vmem>>, vector<24x128xf32>
    %c0_1 = arith.constant 0 : index
    %c0_2 = arith.constant 0 : index
    %1 = vector.load %arg2[%c0_1, %c0_2] : memref<128x128xf32, #tpu.memory_space<vmem>>, vector<128x128xf32>
    %cst = arith.constant dense<0.000000e+00> : vector<24x128xf32>
    %2 = tpu.matmul %0, %1, %cst {dimension_numbers = #tpu.dot_dimension_numbers<[1], [0], [0], [1], [0, 0, 1, 1], [], []>} : vector<24x128xf32>, vector<128x128xf32>, vector<24x128xf32> -> vector<24x128xf32>
    %c0_3 = arith.constant 0 : index
    %c0_4 = arith.constant 0 : index
    %3 = vector.load %arg3[%c0_3, %c0_4] : memref<1x128xf32, #tpu.memory_space<vmem>>, vector<1x128xf32>
    %4 = vector.broadcast %3 : vector<1x128xf32> to vector<24x128xf32>
    %5 = arith.addf %2, %4 : vector<24x128xf32>
    %6 = math.tanh %5 : vector<24x128xf32>
    %c0_5 = arith.constant 0 : index
    %c0_6 = arith.constant 0 : index
    %7 = vector.load %arg4[%c0_5, %c0_6] : memref<128x128xf32, #tpu.memory_space<vmem>>, vector<128x128xf32>
    %cst_7 = arith.constant dense<0.000000e+00> : vector<24x128xf32>
    %8 = tpu.matmul %6, %7, %cst_7 {dimension_numbers = #tpu.dot_dimension_numbers<[1], [0], [0], [1], [0, 0, 1, 1], [], []>} : vector<24x128xf32>, vector<128x128xf32>, vector<24x128xf32> -> vector<24x128xf32>
    %c0_8 = arith.constant 0 : index
    %c0_9 = arith.constant 0 : index
    %9 = vector.load %arg5[%c0_8, %c0_9] : memref<1x128xf32, #tpu.memory_space<vmem>>, vector<1x128xf32>
    %10 = vector.broadcast %9 : vector<1x128xf32> to vector<24x128xf32>
    %11 = arith.addf %8, %10 : vector<24x128xf32>
    %cst_10 = arith.constant 0.000000e+00 : f32
    %12 = vector.broadcast %cst_10 : f32 to vector<24x128xf32>
    %13 = arith.maximumf %11, %12 : vector<24x128xf32>
    %c0_11 = arith.constant 0 : index
    %c0_12 = arith.constant 0 : index
    %14 = vector.load %arg6[%c0_11, %c0_12] : memref<128x128xf32, #tpu.memory_space<vmem>>, vector<128x128xf32>
    %cst_13 = arith.constant dense<0.000000e+00> : vector<24x128xf32>
    %15 = tpu.matmul %13, %14, %cst_13 {dimension_numbers = #tpu.dot_dimension_numbers<[1], [0], [0], [1], [0, 0, 1, 1], [], []>} : vector<24x128xf32>, vector<128x128xf32>, vector<24x128xf32> -> vector<24x128xf32>
    %c0_14 = arith.constant 0 : index
    %c0_15 = arith.constant 0 : index
    %16 = vector.load %arg7[%c0_14, %c0_15] : memref<1x128xf32, #tpu.memory_space<vmem>>, vector<1x128xf32>
    %17 = vector.broadcast %16 : vector<1x128xf32> to vector<24x128xf32>
    %18 = arith.addf %15, %17 : vector<24x128xf32>
    %cst_16 = arith.constant 0.000000e+00 : f32
    %19 = vector.broadcast %cst_16 : f32 to vector<24x128xf32>
    %20 = arith.maximumf %18, %19 : vector<24x128xf32>
    %c0_17 = arith.constant 0 : index
    %c0_18 = arith.constant 0 : index
    %21 = vector.load %arg8[%c0_17, %c0_18] : memref<128x128xf32, #tpu.memory_space<vmem>>, vector<128x128xf32>
    %cst_19 = arith.constant dense<0.000000e+00> : vector<24x128xf32>
    %22 = tpu.matmul %20, %21, %cst_19 {dimension_numbers = #tpu.dot_dimension_numbers<[1], [0], [0], [1], [0, 0, 1, 1], [], []>} : vector<24x128xf32>, vector<128x128xf32>, vector<24x128xf32> -> vector<24x128xf32>
    %c0_20 = arith.constant 0 : index
    %c0_21 = arith.constant 0 : index
    %23 = vector.load %arg9[%c0_20, %c0_21] : memref<1x128xf32, #tpu.memory_space<vmem>>, vector<1x128xf32>
    %24 = vector.broadcast %23 : vector<1x128xf32> to vector<24x128xf32>
    %25 = arith.addf %22, %24 : vector<24x128xf32>
    %26 = arith.subf %25, %0 : vector<24x128xf32>
    %27 = arith.mulf %26, %26 : vector<24x128xf32>
    %c24_i32 = arith.constant 24 : i32
    %28 = arith.muli %arg0, %c24_i32 : i32
    %29 = tpu.iota {dimensions = array<i32: 0>} : vector<24x1xi32>
    %30 = vector.broadcast %28 : i32 to vector<24x1xi32>
    %31 = arith.addi %30, %29 : vector<24x1xi32>
    %c40_i32 = arith.constant 40 : i32
    %32 = vector.broadcast %c40_i32 : i32 to vector<24x1xi32>
    %33 = arith.cmpi slt, %31, %32 : vector<24x1xi32>
    %cst_22 = arith.constant 0.000000e+00 : f32
    %34 = vector.shape_cast %33 : vector<24x1xi1> to vector<24x1xi1>
    %35 = vector.broadcast %34 : vector<24x1xi1> to vector<24x128xi1>
    %36 = vector.broadcast %cst_22 : f32 to vector<24x128xf32>
    %37 = arith.select %35, %27, %36 : vector<24x128xi1>, vector<24x128xf32>
    %c0_23 = arith.constant 0 : index
    %c0_24 = arith.constant 0 : index
    %38 = vector.load %arg10[%c0_23, %c0_24] : memref<24x128xf32, #tpu.memory_space<vmem>>, vector<24x128xf32>
    tpu.vector_store %arg10[%c0_23, %c0_24], %13 {strides = array<i32>} : memref<24x128xf32, #tpu.memory_space<vmem>>, vector<24x128xf32>,
    %cst_25 = arith.constant dense<0.000000e+00> : vector<128xf32>
    %39 = vector.multi_reduction <add>, %37, %cst_25 [0] : vector<24x128xf32> to vector<128xf32>
    %40 = vector.shape_cast %39 : vector<128xf32> to vector<1x128xf32>
    %41 = vector.shape_cast %40 : vector<1x128xf32> to vector<1x1x128xf32>
    %c0_26 = arith.constant 0 : index
    %c0_27 = arith.constant 0 : index
    %c0_28 = arith.constant 0 : index
    %42 = vector.load %arg11[%c0_26, %c0_27, %c0_28] : memref<1x1x128xf32, #tpu.memory_space<vmem>>, vector<1x1x128xf32>
    tpu.vector_store %arg11[%c0_26, %c0_27, %c0_28], %41 {strides = array<i32>} : memref<1x1x128xf32, #tpu.memory_space<vmem>>, vector<1x1x128xf32>,
    return
  }
  func.func @transform_0(%arg0: i32) -> (i32, i32) {
    %c0_i32 = arith.constant 0 : i32
    %c0_i32_0 = arith.constant 0 : i32
    return %arg0, %c0_i32 : i32, i32
  }
  func.func @transform_1(%arg0: i32) -> (i32, i32) {
    %c0_i32 = arith.constant 0 : i32
    %c0_i32_0 = arith.constant 0 : i32
    %c0_i32_1 = arith.constant 0 : i32
    return %c0_i32, %c0_i32_0 : i32, i32
  }
  func.func @transform_2(%arg0: i32) -> (i32, i32) {
    %c0_i32 = arith.constant 0 : i32
    %c0_i32_0 = arith.constant 0 : i32
    %c0_i32_1 = arith.constant 0 : i32
    return %c0_i32, %c0_i32_0 : i32, i32
  }
  func.func @transform_3(%arg0: i32) -> (i32, i32) {
    %c0_i32 = arith.constant 0 : i32
    %c0_i32_0 = arith.constant 0 : i32
    %c0_i32_1 = arith.constant 0 : i32
    return %c0_i32, %c0_i32_0 : i32, i32
  }
  func.func @transform_4(%arg0: i32) -> (i32, i32) {
    %c0_i32 = arith.constant 0 : i32
    %c0_i32_0 = arith.constant 0 : i32
    %c0_i32_1 = arith.constant 0 : i32
    return %c0_i32, %c0_i32_0 : i32, i32
  }
  func.func @transform_5(%arg0: i32) -> (i32, i32) {
    %c0_i32 = arith.constant 0 : i32
    %c0_i32_0 = arith.constant 0 : i32
    %c0_i32_1 = arith.constant 0 : i32
    return %c0_i32, %c0_i32_0 : i32, i32
  }
  func.func @transform_6(%arg0: i32) -> (i32, i32) {
    %c0_i32 = arith.constant 0 : i32
    %c0_i32_0 = arith.constant 0 : i32
    %c0_i32_1 = arith.constant 0 : i32
    return %c0_i32, %c0_i32_0 : i32, i32
  }
  func.func @transform_7(%arg0: i32) -> (i32, i32) {
    %c0_i32 = arith.constant 0 : i32
    %c0_i32_0 = arith.constant 0 : i32
    %c0_i32_1 = arith.constant 0 : i32
    return %c0_i32, %c0_i32_0 : i32, i32
  }
  func.func @transform_8(%arg0: i32) -> (i32, i32) {
    %c0_i32 = arith.constant 0 : i32
    %c0_i32_0 = arith.constant 0 : i32
    %c0_i32_1 = arith.constant 0 : i32
    return %c0_i32, %c0_i32_0 : i32, i32
  }
  func.func @transform_9(%arg0: i32) -> (i32, i32) {
    %c0_i32 = arith.constant 0 : i32
    %c0_i32_0 = arith.constant 0 : i32
    return %arg0, %c0_i32 : i32, i32
  }
  func.func @transform_10(%arg0: i32) -> (i32, i32, i32) {
    %c0_i32 = arith.constant 0 : i32
    %c0_i32_0 = arith.constant 0 : i32
    %c0_i32_1 = arith.constant 0 : i32
    return %arg0, %c0_i32, %c0_i32_0 : i32, i32, i32
  }
}

</mosaic_0001>

<llo_original>
// kernel: tpu_custom_call.1
$region0: #{tpu_custom_call.1}
  #allocation0 [shape = 'u32[]', space=smem, size = 0x4, offset = 0x4, fixed_abs, tag = 'smem constant byte address 0x4 - core index']
  #allocation1 [shape = 'u32[144,128]{1,0:T(1,128)}', space=vmem, size = 0x12000, scoped, tag = 'internal scratch']
  %s0 = inlined_call_operand.hbm [shape: f32[48,128], index: 0, kind: input, shape index: {}]
  %s1 = inlined_call_operand.hbm [shape: f32[128,128], index: 1, kind: input, shape index: {}]
  %s2 = inlined_call_operand.vmem [shape: f32[1,128], index: 2, kind: input, shape index: {}]
  %s3 = inlined_call_operand.hbm [shape: f32[128,128], index: 3, kind: input, shape index: {}]
  %s4 = inlined_call_operand.vmem [shape: f32[1,128], index: 4, kind: input, shape index: {}]
  %s5 = inlined_call_operand.hbm [shape: f32[128,128], index: 5, kind: input, shape index: {}]
  %s6 = inlined_call_operand.vmem [shape: f32[1,128], index: 6, kind: input, shape index: {}]
  %s7 = inlined_call_operand.hbm [shape: f32[128,128], index: 7, kind: input, shape index: {}]
  %s8 = inlined_call_operand.vmem [shape: f32[1,128], index: 8, kind: input, shape index: {}]
  %s9 = inlined_call_operand.hbm [shape: f32[48,128], index: 9, kind: output, shape index: {0}]
  %s10 = inlined_call_operand.hbm [shape: f32[2,1,128], index: 10, kind: output, shape index: {1}]
  %11 = xla_tuple %s9, %s10
  %s12 = sld [smem:[#allocation0]]
  $region97: #{tpu_custom_call.1} parent=0
    _
  %s14 = ssub.s32 1, %s12
  %s15 = scalar_select 0, %s14, %s12
  $region1: #{tpu_custom_call.1} parent=0
    #allocation2 [shape = 'u8[24576]{0}', space=vmem, size = 0x6000, scoped, tag = 'input window, operand 0']
    #allocation3 [shape = 's32[2]{0}', space=sflag, size = 0x8, scoped, tag = 'scoped memory for tpu_custom_call.1']
    #allocation4 [shape = 's32[2]{0}', space=sflag, size = 0x8, scoped, tag = 'scoped memory for tpu_custom_call.1']
    #allocation5 [shape = 'u8[65536]{0}', space=vmem, size = 0x10000, scoped, tag = 'input window, operand 1, single buffered']
    #allocation6 [shape = 's32[1]{0}', space=sflag, size = 0x4, scoped, tag = 'scoped memory for tpu_custom_call.1']
    #allocation7 [shape = 'u8[65536]{0}', space=vmem, size = 0x10000, scoped, tag = 'input window, operand 3, single buffered']
    #allocation8 [shape = 'u8[65536]{0}', space=vmem, size = 0x10000, scoped, tag = 'input window, operand 5, single buffered']
    #allocation9 [shape = 's32[1]{0}', space=sflag, size = 0x4, scoped, tag = 'scoped memory for tpu_custom_call.1']
    #allocation10 [shape = 'u8[65536]{0}', space=vmem, size = 0x10000, scoped, tag = 'input window, operand 7, single buffered']
    #allocation11 [shape = 'u8[24576]{0}', space=vmem, size = 0x6000, scoped, tag = 'output window, operand 0']
    #allocation12 [shape = 'u8[1024]{0}', space=vmem, size = 0x400, scoped, tag = 'output window, operand 1']
    #allocation13 [shape = 's32[2]{0}', space=sflag, size = 0x8, scoped, tag = 'scoped memory for tpu_custom_call.1']
    %16 = vsyncpa [#allocation3], 0
    %s17 = scalar_lea.sflag [#allocation3], 1
    %18 = vsyncpa %s17, 0
    %19 = vsyncpa [#allocation6], 0
    %20 = vsyncpa [#allocation9], 0
    %21 = vsyncpa [#allocation4], 0
    %s22 = scalar_lea.sflag [#allocation4], 1
    %23 = vsyncpa %s22, 0
    %24 = vsyncpa [#allocation13], 0
    %s25 = scalar_lea.sflag [#allocation13], 1
    %26 = vsyncpa %s25, 0
    loop: start=0, step=1, limit=4
    $region2: #{tpu_custom_call.1} parent=1 // loop_pre_header
      _
    $region3: #{tpu_custom_call.1} parent=1 // loop_header
      %s28 = sphi 0, %s32
      %p29 = scmp.ge.s32.totalorder %s28, 4
      %s38 = sphi 0, %s40
      %s41 = sphi 0, %s38
      %s42 = sphi 0, %s41
      %s58 = sphi 0, %s42
      %s62 = sphi 0, %s62
      %s64 = sphi 0, %s62
      %s65 = sphi 0, %s64
      %s79 = sphi 0, %s65
      %s83 = sphi 0, %s83
      %s85 = sphi 0, %s83
      %s86 = sphi 0, %s85
      %s100 = sphi 0, %s86
      %s104 = sphi 0, %s104
      %s106 = sphi 0, %s104
      %s107 = sphi 0, %s106
      %s121 = sphi 0, %s107
      %s125 = sphi 0, %s125
      %s127 = sphi 0, %s125
      %s128 = sphi 0, %s127
      %s142 = sphi 0, %s128
      %s146 = sphi 0, %s146
      %s148 = sphi 0, %s146
      %s149 = sphi 0, %s148
      %s163 = sphi 0, %s149
      %s167 = sphi 0, %s167
      %s169 = sphi 0, %s167
      %s170 = sphi 0, %s169
      %s184 = sphi 0, %s170
      %s188 = sphi 0, %s188
      %s190 = sphi 0, %s188
      %s191 = sphi 0, %s190
      %s205 = sphi 0, %s191
      %s209 = sphi 0, %s209
      %s211 = sphi 0, %s209
      %s212 = sphi 0, %s211
      %s226 = sphi 0, %s212
      %s232 = sphi 0, %s234
      %s235 = sphi 0, %s232
      %s236 = sphi 0, %s235
      %s252 = sphi 0, %s236
      %s258 = sphi 0, %s260
      %s261 = sphi 0, %s258
      %s262 = sphi 0, %s261
      %s278 = sphi 0, %s262
    $region4: #{tpu_custom_call.1} parent=1 // loop_header_branch
      %31 = sbr.rel (%p29) target = $region8
    $region5: #{tpu_custom_call.1} parent=1 // loop_body
      %s33 = ssub.s32 %s28, 1
      %s34 = ssub.s32 %s28, 2
      %s35 = sadd.s32 %s28, 1
      %s36 = ssub.s32 %s28, %s35
      %p37 = scmp.eq.s32.totalorder %s36, 0
      %s39 = sadd.s32 %s38, 1
      %s40 = scalar_select %p37, %s38, %s39
      %p43 = pneg %p37
      %p44 = scmp.eq.s32.totalorder %s28, 1
      %p45 = por %p43, %p44
      %p46 = scmp.ne.s32.totalorder %s38, %s41
      %p47 = scmp.eq.s32.totalorder %s28, 0
      %p48 = por %p46, %p47
      %p49 = scmp.ne.s32.totalorder %s38, %s41
      %p50 = scmp.eq.s32.totalorder %s33, 1
      %p51 = por %p49, %p50
      %p52 = scmp.ne.s32.totalorder %s41, %s42
      %p53 = scmp.eq.s32.totalorder %s33, 0
      %p54 = por %p52, %p53
      %p55 = scmp.ne.s32.totalorder %s41, %s42
      %p56 = scmp.eq.s32.totalorder %s34, 1
      %p57 = por %p55, %p56
      %p59 = scmp.ne.s32.totalorder %s42, %s58
      %p60 = scmp.eq.s32.totalorder %s34, 0
      %p61 = por %p59, %p60
      %s63 = sadd.s32 %s62, 1
      %p66 = scmp.eq.s32.totalorder %s28, 1
      %p67 = scmp.ne.s32.totalorder %s62, %s64
      %p68 = scmp.eq.s32.totalorder %s28, 0
      %p69 = por %p67, %p68
      %p70 = scmp.ne.s32.totalorder %s62, %s64
      %p71 = scmp.eq.s32.totalorder %s33, 1
      %p72 = por %p70, %p71
      %p73 = scmp.ne.s32.totalorder %s64, %s65
      %p74 = scmp.eq.s32.totalorder %s33, 0
      %p75 = por %p73, %p74
      %p76 = scmp.ne.s32.totalorder %s64, %s65
      %p77 = scmp.eq.s32.totalorder %s34, 1
      %p78 = por %p76, %p77
      %p80 = scmp.ne.s32.totalorder %s65, %s79
      %p81 = scmp.eq.s32.totalorder %s34, 0
      %p82 = por %p80, %p81
      %s84 = sadd.s32 %s83, 1
      %p87 = scmp.eq.s32.totalorder %s28, 1
      %p88 = scmp.ne.s32.totalorder %s83, %s85
      %p89 = scmp.eq.s32.totalorder %s28, 0
      %p90 = por %p88, %p89
      %p91 = scmp.ne.s32.totalorder %s83, %s85
      %p92 = scmp.eq.s32.totalorder %s33, 1
      %p93 = por %p91, %p92
      %p94 = scmp.ne.s32.totalorder %s85, %s86
      %p95 = scmp.eq.s32.totalorder %s33, 0
      %p96 = por %p94, %p95
      %p97 = scmp.ne.s32.totalorder %s85, %s86
      %p98 = scmp.eq.s32.totalorder %s34, 1
      %p99 = por %p97, %p98
      %p101 = scmp.ne.s32.totalorder %s86, %s100
      %p102 = scmp.eq.s32.totalorder %s34, 0
      %p103 = por %p101, %p102
      %s105 = sadd.s32 %s104, 1
      %p108 = scmp.eq.s32.totalorder %s28, 1
      %p109 = scmp.ne.s32.totalorder %s104, %s106
      %p110 = scmp.eq.s32.totalorder %s28, 0
      %p111 = por %p109, %p110
      %p112 = scmp.ne.s32.totalorder %s104, %s106
      %p113 = scmp.eq.s32.totalorder %s33, 1
      %p114 = por %p112, %p113
      %p115 = scmp.ne.s32.totalorder %s106, %s107
      %p116 = scmp.eq.s32.totalorder %s33, 0
      %p117 = por %p115, %p116
      %p118 = scmp.ne.s32.totalorder %s106, %s107
      %p119 = scmp.eq.s32.totalorder %s34, 1
      %p120 = por %p118, %p119
      %p122 = scmp.ne.s32.totalorder %s107, %s121
      %p123 = scmp.eq.s32.totalorder %s34, 0
      %p124 = por %p122, %p123
      %s126 = sadd.s32 %s125, 1
      %p129 = scmp.eq.s32.totalorder %s28, 1
      %p130 = scmp.ne.s32.totalorder %s125, %s127
      %p131 = scmp.eq.s32.totalorder %s28, 0
      %p132 = por %p130, %p131
      %p133 = scmp.ne.s32.totalorder %s125, %s127
      %p134 = scmp.eq.s32.totalorder %s33, 1
      %p135 = por %p133, %p134
      %p136 = scmp.ne.s32.totalorder %s127, %s128
      %p137 = scmp.eq.s32.totalorder %s33, 0
      %p138 = por %p136, %p137
      %p139 = scmp.ne.s32.totalorder %s127, %s128
      %p140 = scmp.eq.s32.totalorder %s34, 1
      %p141 = por %p139, %p140
      %p143 = scmp.ne.s32.totalorder %s128, %s142
      %p144 = scmp.eq.s32.totalorder %s34, 0
      %p145 = por %p143, %p144
      %s147 = sadd.s32 %s146, 1
      %p150 = scmp.eq.s32.totalorder %s28, 1
      %p151 = scmp.ne.s32.totalorder %s146, %s148
      %p152 = scmp.eq.s32.totalorder %s28, 0
      %p153 = por %p151, %p152
      %p154 = scmp.ne.s32.totalorder %s146, %s148
      %p155 = scmp.eq.s32.totalorder %s33, 1
      %p156 = por %p154, %p155
      %p157 = scmp.ne.s32.totalorder %s148, %s149
      %p158 = scmp.eq.s32.totalorder %s33, 0
      %p159 = por %p157, %p158
      %p160 = scmp.ne.s32.totalorder %s148, %s149
      %p161 = scmp.eq.s32.totalorder %s34, 1
      %p162 = por %p160, %p161
      %p164 = scmp.ne.s32.totalorder %s149, %s163
      %p165 = scmp.eq.s32.totalorder %s34, 0
      %p166 = por %p164, %p165
      %s168 = sadd.s32 %s167, 1
      %p171 = scmp.eq.s32.totalorder %s28, 1
      %p172 = scmp.ne.s32.totalorder %s167, %s169
      %p173 = scmp.eq.s32.totalorder %s28, 0
      %p174 = por %p172, %p173
      %p175 = scmp.ne.s32.totalorder %s167, %s169
      %p176 = scmp.eq.s32.totalorder %s33, 1
      %p177 = por %p175, %p176
      %p178 = scmp.ne.s32.totalorder %s169, %s170
      %p179 = scmp.eq.s32.totalorder %s33, 0
      %p180 = por %p178, %p179
      %p181 = scmp.ne.s32.totalorder %s169, %s170
      %p182 = scmp.eq.s32.totalorder %s34, 1
      %p183 = por %p181, %p182
      %p185 = scmp.ne.s32.totalorder %s170, %s184
      %p186 = scmp.eq.s32.totalorder %s34, 0
      %p187 = por %p185, %p186
      %s189 = sadd.s32 %s188, 1
      %p192 = scmp.eq.s32.totalorder %s28, 1
      %p193 = scmp.ne.s32.totalorder %s188, %s190
      %p194 = scmp.eq.s32.totalorder %s28, 0
      %p195 = por %p193, %p194
      %p196 = scmp.ne.s32.totalorder %s188, %s190
      %p197 = scmp.eq.s32.totalorder %s33, 1
      %p198 = por %p196, %p197
      %p199 = scmp.ne.s32.totalorder %s190, %s191
      %p200 = scmp.eq.s32.totalorder %s33, 0
      %p201 = por %p199, %p200
      %p202 = scmp.ne.s32.totalorder %s190, %s191
      %p203 = scmp.eq.s32.totalorder %s34, 1
      %p204 = por %p202, %p203
      %p206 = scmp.ne.s32.totalorder %s191, %s205
      %p207 = scmp.eq.s32.totalorder %s34, 0
      %p208 = por %p206, %p207
      %s210 = sadd.s32 %s209, 1
      %p213 = scmp.eq.s32.totalorder %s28, 1
      %p214 = scmp.ne.s32.totalorder %s209, %s211
      %p215 = scmp.eq.s32.totalorder %s28, 0
      %p216 = por %p214, %p215
      %p217 = scmp.ne.s32.totalorder %s209, %s211
      %p218 = scmp.eq.s32.totalorder %s33, 1
      %p219 = por %p217, %p218
      %p220 = scmp.ne.s32.totalorder %s211, %s212
      %p221 = scmp.eq.s32.totalorder %s33, 0
      %p222 = por %p220, %p221
      %p223 = scmp.ne.s32.totalorder %s211, %s212
      %p224 = scmp.eq.s32.totalorder %s34, 1
      %p225 = por %p223, %p224
      %p227 = scmp.ne.s32.totalorder %s212, %s226
      %p228 = scmp.eq.s32.totalorder %s34, 0
      %p229 = por %p227, %p228
      %s230 = ssub.s32 %s28, %s35
      %p231 = scmp.eq.s32.totalorder %s230, 0
      %s233 = sadd.s32 %s232, 1
      %s234 = scalar_select %p231, %s232, %s233
      %p237 = pneg %p231
      %p238 = scmp.eq.s32.totalorder %s28, 1
      %p239 = por %p237, %p238
      %p240 = scmp.ne.s32.totalorder %s232, %s235
      %p241 = scmp.eq.s32.totalorder %s28, 0
      %p242 = por %p240, %p241
      %p243 = scmp.ne.s32.totalorder %s232, %s235
      %p244 = scmp.eq.s32.totalorder %s33, 1
      %p245 = por %p243, %p244
      %p246 = scmp.ne.s32.totalorder %s235, %s236
      %p247 = scmp.eq.s32.totalorder %s33, 0
      %p248 = por %p246, %p247
      %p249 = scmp.ne.s32.totalorder %s235, %s236
      %p250 = scmp.eq.s32.totalorder %s34, 1
      %p251 = por %p249, %p250
      %p253 = scmp.ne.s32.totalorder %s236, %s252
      %p254 = scmp.eq.s32.totalorder %s34, 0
      %p255 = por %p253, %p254
      %s256 = ssub.s32 %s28, %s35
      %p257 = scmp.eq.s32.totalorder %s256, 0
      %s259 = sadd.s32 %s258, 1
      %s260 = scalar_select %p257, %s258, %s259
      %p263 = pneg %p257
      %p264 = scmp.eq.s32.totalorder %s28, 1
      %p265 = por %p263, %p264
      %p266 = scmp.ne.s32.totalorder %s258, %s261
      %p267 = scmp.eq.s32.totalorder %s28, 0
      %p268 = por %p266, %p267
      %p269 = scmp.ne.s32.totalorder %s258, %s261
      %p270 = scmp.eq.s32.totalorder %s33, 1
      %p271 = por %p269, %p270
      %p272 = scmp.ne.s32.totalorder %s261, %s262
      %p273 = scmp.eq.s32.totalorder %s33, 0
      %p274 = por %p272, %p273
      %p275 = scmp.ne.s32.totalorder %s261, %s262
      %p276 = scmp.eq.s32.totalorder %s34, 1
      %p277 = por %p275, %p276
      %p279 = scmp.ne.s32.totalorder %s262, %s278
      %p280 = scmp.eq.s32.totalorder %s34, 0
      %p281 = por %p279, %p280
      %p282 = scmp.le.s32.totalorder 1, %s28
      %p283 = scmp.lt.s32.totalorder %s28, 3
      %p284 = pnand %p282, %p283
      %p285 = pneg %p284
      // Predicated region
      $region9: #{tpu_custom_call.1} parent=5 // pred_check
        _
      $region10: #{tpu_custom_call.1} parent=5 // pred_check_branch
        %287 = sbr.rel (%p284) target = $region12
      $region11: #{tpu_custom_call.1} parent=5 // pred_region
        %s288 = ssub.s32 %s28, 1
        // Predicated region
        $region13: #{tpu_custom_call.1} parent=11 // pred_check
          %p289 = pneg %p75
        $region14: #{tpu_custom_call.1} parent=11 // pred_check_branch
          %291 = sbr.rel (%p289) target = $region16
        $region15: #{tpu_custom_call.1} parent=11 // pred_region
          %s293 = ssub.s32 2048, 2048
          %294 = vsyncadd [#allocation6], %s293
          %s295 = sshll.u32 [#allocation5], 4
          %s296 = int_to_ptr.vmem [resolvable:$true] %s295
          %301 = dma.hbm_to_vmem [thread:$0]  %s1, 2048, %s296, [#allocation6], 128, 128, 8
        $region16: #{tpu_custom_call.1} parent=11 // pred_fallthru
          _
        // Predicated region
        $region17: #{tpu_custom_call.1} parent=11 // pred_check
          %p302 = pneg %p96
        $region18: #{tpu_custom_call.1} parent=11 // pred_check_branch
          %304 = sbr.rel (%p302) target = $region20
        $region19: #{tpu_custom_call.1} parent=11 // pred_region
          _
        $region20: #{tpu_custom_call.1} parent=11 // pred_fallthru
          _
        // Predicated region
        $region21: #{tpu_custom_call.1} parent=11 // pred_check
          %p305 = pneg %p117
        $region22: #{tpu_custom_call.1} parent=11 // pred_check_branch
          %307 = sbr.rel (%p305) target = $region24
        $region23: #{tpu_custom_call.1} parent=11 // pred_region
          %s309 = ssub.s32 2048, 2048
          %310 = vsyncadd [#allocation6], %s309
          %s311 = sshll.u32 [#allocation7], 4
          %s312 = int_to_ptr.vmem [resolvable:$true] %s311
          %317 = dma.hbm_to_vmem [thread:$0]  %s3, 2048, %s312, [#allocation6], 128, 128, 8
        $region24: #{tpu_custom_call.1} parent=11 // pred_fallthru
          _
        // Predicated region
        $region25: #{tpu_custom_call.1} parent=11 // pred_check
          %p318 = pneg %p138
        $region26: #{tpu_custom_call.1} parent=11 // pred_check_branch
          %320 = sbr.rel (%p318) target = $region28
        $region27: #{tpu_custom_call.1} parent=11 // pred_region
          _
        $region28: #{tpu_custom_call.1} parent=11 // pred_fallthru
          _
        // Predicated region
        $region29: #{tpu_custom_call.1} parent=11 // pred_check
          %p321 = pneg %p159
        $region30: #{tpu_custom_call.1} parent=11 // pred_check_branch
          %323 = sbr.rel (%p321) target = $region32
        $region31: #{tpu_custom_call.1} parent=11 // pred_region
          %s325 = ssub.s32 2048, 2048
          %326 = vsyncadd [#allocation9], %s325
          %s327 = sshll.u32 [#allocation8], 4
          %s328 = int_to_ptr.vmem [resolvable:$true] %s327
          %333 = dma.hbm_to_vmem [thread:$0]  %s5, 2048, %s328, [#allocation9], 128, 128, 8
        $region32: #{tpu_custom_call.1} parent=11 // pred_fallthru
          _
        // Predicated region
        $region33: #{tpu_custom_call.1} parent=11 // pred_check
          %p334 = pneg %p180
        $region34: #{tpu_custom_call.1} parent=11 // pred_check_branch
          %336 = sbr.rel (%p334) target = $region36
        $region35: #{tpu_custom_call.1} parent=11 // pred_region
          _
        $region36: #{tpu_custom_call.1} parent=11 // pred_fallthru
          _
        // Predicated region
        $region37: #{tpu_custom_call.1} parent=11 // pred_check
          %p337 = pneg %p201
        $region38: #{tpu_custom_call.1} parent=11 // pred_check_branch
          %339 = sbr.rel (%p337) target = $region40
        $region39: #{tpu_custom_call.1} parent=11 // pred_region
          %s341 = ssub.s32 2048, 2048
          %342 = vsyncadd [#allocation9], %s341
          %s343 = sshll.u32 [#allocation10], 4
          %s344 = int_to_ptr.vmem [resolvable:$true] %s343
          %349 = dma.hbm_to_vmem [thread:$0]  %s7, 2048, %s344, [#allocation9], 128, 128, 8
        $region40: #{tpu_custom_call.1} parent=11 // pred_fallthru
          _
        // Predicated region
        $region41: #{tpu_custom_call.1} parent=11 // pred_check
          %p350 = pneg %p222
        $region42: #{tpu_custom_call.1} parent=11 // pred_check_branch
          %352 = sbr.rel (%p350) target = $region44
        $region43: #{tpu_custom_call.1} parent=11 // pred_region
          _
        $region44: #{tpu_custom_call.1} parent=11 // pred_fallthru
          _
      $region12: #{tpu_custom_call.1} parent=5 // pred_fallthru
        _
      %p353 = scmp.lt.s32.totalorder %s28, 2
      // Predicated region
      $region45: #{tpu_custom_call.1} parent=5 // pred_check
        %p354 = pneg %p353
      $region46: #{tpu_custom_call.1} parent=5 // pred_check_branch
        %356 = sbr.rel (%p354) target = $region48
      $region47: #{tpu_custom_call.1} parent=5 // pred_region
        // Predicated region
        $region49: #{tpu_custom_call.1} parent=47 // pred_check
          %p357 = pneg %p48
        $region50: #{tpu_custom_call.1} parent=47 // pred_check_branch
          %359 = sbr.rel (%p357) target = $region52
        $region51: #{tpu_custom_call.1} parent=47 // pred_region
          %s360 = sand.u32 %s38, 1
          %s361 = scalar_lea.sflag [#allocation3], %s360
          %s362 = sand.u32 %s38, 1
          %s363 = smul.addr %s362, 24
          %s364 = scalar_lea.vmem [#allocation2], %s363
          %s365 = smul.u32 3, %s28
          %s367 = ssub.s32 384, 384
          %368 = vsyncadd %s361, %s367
          %s369 = smul.addr %s365, 128
          %s370 = scalar_lea.hbm %s0, %s369
          %s371 = sshll.u32 %s364, 4
          %s372 = int_to_ptr.vmem [resolvable:$true] %s371
          %377 = dma.hbm_to_vmem [thread:$0]  %s370, 384, %s372, %s361, 128, 128, 8
        $region52: #{tpu_custom_call.1} parent=47 // pred_fallthru
          _
      $region48: #{tpu_custom_call.1} parent=5 // pred_fallthru
        _
      %p378 = scmp.le.s32.totalorder 1, %s28
      %p379 = scmp.lt.s32.totalorder %s28, 3
      %p380 = pnand %p378, %p379
      %p381 = pneg %p380
      // Predicated region
      $region53: #{tpu_custom_call.1} parent=5 // pred_check
        _
      $region54: #{tpu_custom_call.1} parent=5 // pred_check_branch
        %383 = sbr.rel (%p380) target = $region56
      $region55: #{tpu_custom_call.1} parent=5 // pred_region
        %s384 = ssub.s32 %s28, 1
        %s385 = sand.u32 %s41, 1
        %s386 = scalar_lea.sflag [#allocation3], %s385
        %s387 = sand.u32 %s41, 1
        %s388 = smul.addr %s387, 24
        %s389 = scalar_lea.vmem [#allocation2], %s388
        // Predicated region
        $region57: #{tpu_custom_call.1} parent=55 // pred_check
          %p390 = pneg %p54
        $region58: #{tpu_custom_call.1} parent=55 // pred_check_branch
          %392 = sbr.rel (%p390) target = $region60
        $region59: #{tpu_custom_call.1} parent=55 // pred_region
          %393 = dma.done %s386, 384
        $region60: #{tpu_custom_call.1} parent=55 // pred_fallthru
          _
        // Predicated region
        $region61: #{tpu_custom_call.1} parent=55 // pred_check
          %p394 = pneg %p75
        $region62: #{tpu_custom_call.1} parent=55 // pred_check_branch
          %396 = sbr.rel (%p394) target = $region64
        $region63: #{tpu_custom_call.1} parent=55 // pred_region
          %397 = dma.done [#allocation6], 2048
        $region64: #{tpu_custom_call.1} parent=55 // pred_fallthru
          _
        // Predicated region
        $region65: #{tpu_custom_call.1} parent=55 // pred_check
          %p398 = pneg %p117
        $region66: #{tpu_custom_call.1} parent=55 // pred_check_branch
          %400 = sbr.rel (%p398) target = $region68
        $region67: #{tpu_custom_call.1} parent=55 // pred_region
          %401 = dma.done [#allocation6], 2048
        $region68: #{tpu_custom_call.1} parent=55 // pred_fallthru
          _
        // Predicated region
        $region69: #{tpu_custom_call.1} parent=55 // pred_check
          %p402 = pneg %p159
        $region70: #{tpu_custom_call.1} parent=55 // pred_check_branch
          %404 = sbr.rel (%p402) target = $region72
        $region71: #{tpu_custom_call.1} parent=55 // pred_region
          %405 = dma.done [#allocation9], 2048
        $region72: #{tpu_custom_call.1} parent=55 // pred_fallthru
          _
        // Predicated region
        $region73: #{tpu_custom_call.1} parent=55 // pred_check
          %p406 = pneg %p201
        $region74: #{tpu_custom_call.1} parent=55 // pred_check_branch
          %408 = sbr.rel (%p406) target = $region76
        $region75: #{tpu_custom_call.1} parent=55 // pred_region
          %409 = dma.done [#allocation9], 2048
        $region76: #{tpu_custom_call.1} parent=55 // pred_fallthru
          _
        %s410 = sand.u32 %s41, 1
        %s411 = scalar_lea.sflag [#allocation3], %s410
        %s412 = sand.u32 %s41, 1
        %s413 = smul.addr %s412, 24
        %s414 = scalar_lea.vmem [#allocation2], %s413
        %p415 = pneg %p54
        %p416 = pneg %p51
        %p417 = pneg %p75
        %p418 = pneg %p72
        %p419 = pneg %p96
        %p420 = pneg %p93
        %p421 = pneg %p117
        %p422 = pneg %p114
        %p423 = pneg %p138
        %p424 = pneg %p135
        %p425 = pneg %p159
        %p426 = pneg %p156
        %p427 = pneg %p180
        %p428 = pneg %p177
        %p429 = pneg %p201
        %p430 = pneg %p198
        %p431 = pneg %p222
        %p432 = pneg %p219
        %p433 = pneg %p248
        %p434 = pneg %p245
        %s435 = sand.u32 %s235, 1
        %s436 = scalar_lea.sflag [#allocation4], %s435
        %s437 = sand.u32 %s235, 1
        %s438 = smul.addr %s437, 24
        %s439 = scalar_lea.vmem [#allocation11], %s438
        %p440 = pneg %p274
        %p441 = pneg %p271
        %s442 = sand.u32 %s261, 1
        %s443 = scalar_lea.sflag [#allocation13], %s442
        %s444 = sand.u32 %s261, 1
        %s445 = scalar_lea.vmem [#allocation12], %s444
        %s446 = smul.u32 3, %s33
        %s447 = smul.u32 3, %s33
        %v448 = vld [vmem:[%s389] sm:$0xff]
        %v449 = vld [vmem:[%s389 + $0x8] sm:$0xff]
        %v450 = vld [vmem:[%s389 + $0x10] sm:$0xff]
        %v451 = vld [vmem:[#allocation5] sm:$0xff]
        %v452 = vld [vmem:[#allocation5 + $0x8] sm:$0xff]
        %v453 = vld [vmem:[#allocation5 + $0x10] sm:$0xff]
        %v454 = vld [vmem:[#allocation5 + $0x18] sm:$0xff]
        %v455 = vld [vmem:[#allocation5 + $0x20] sm:$0xff]
        %v456 = vld [vmem:[#allocation5 + $0x28] sm:$0xff]
        %v457 = vld [vmem:[#allocation5 + $0x30] sm:$0xff]
        %v458 = vld [vmem:[#allocation5 + $0x38] sm:$0xff]
        %v459 = vld [vmem:[#allocation5 + $0x40] sm:$0xff]
        %v460 = vld [vmem:[#allocation5 + $0x48] sm:$0xff]
        %v461 = vld [vmem:[#allocation5 + $0x50] sm:$0xff]
        %v462 = vld [vmem:[#allocation5 + $0x58] sm:$0xff]
        %v463 = vld [vmem:[#allocation5 + $0x60] sm:$0xff]
        %v464 = vld [vmem:[#allocation5 + $0x68] sm:$0xff]
        %v465 = vld [vmem:[#allocation5 + $0x70] sm:$0xff]
        %v466 = vld [vmem:[#allocation5 + $0x78] sm:$0xff]
        %v467 = vld [vmem:[%s2] sm:$0x1]
        %v469 = vlaneseq
        %v470 = vshrl.u32 %v469, 7
        %v471 = vsub.s32 0, %v470
        %v472 = vrot.slane %v467, %v471
        %474 = vmatprep.subr.mxu0 0.0
        %475 = vmatpush1.msra.mxu0 %v466
        %476 = vmatprep.subr.mxu0 0.0
        %477 = vmatpush1.msra.mxu0 %v465
        %478 = vmatprep.subr.mxu0 0.0
        %479 = vmatpush1.msra.mxu0 %v464
        %480 = vmatprep.subr.mxu0 0.0
        %481 = vmatpush1.msra.mxu0 %v463
        %482 = vmatprep.subr.mxu0 0.0
        %483 = vmatpush1.msra.mxu0 %v462
        %484 = vmatprep.subr.mxu0 0.0
        %485 = vmatpush1.msra.mxu0 %v461
        %486 = vmatprep.subr.mxu0 0.0
        %487 = vmatpush1.msra.mxu0 %v460
        %488 = vmatprep.subr.mxu0 0.0
        %489 = vmatpush1.msra.mxu0 %v459
        %490 = vmatprep.subr.mxu0 0.0
        %491 = vmatpush1.msra.mxu0 %v458
        %492 = vmatprep.subr.mxu0 0.0
        %493 = vmatpush1.msra.mxu0 %v457
        %494 = vmatprep.subr.mxu0 0.0
        %495 = vmatpush1.msra.mxu0 %v456
        %496 = vmatprep.subr.mxu0 0.0
        %497 = vmatpush1.msra.mxu0 %v455
        %498 = vmatprep.subr.mxu0 0.0
        %499 = vmatpush1.msra.mxu0 %v454
        %500 = vmatprep.subr.mxu0 0.0
        %501 = vmatpush1.msra.mxu0 %v453
        %502 = vmatprep.subr.mxu0 0.0
        %503 = vmatpush1.msra.mxu0 %v452
        %504 = vmatprep.subr.mxu0 0.0
        %505 = vmatpush1.msra.mxu0 %v451
        %506 = vmatprep.subr.mxu0 0.0
        %507 = vmatpush2.msra.mxu0 0.0
        %508 = vmatprep.subr.mxu0 0.0
        %509 = vmatpush2.msra.mxu0 0.0
        %510 = vmatprep.subr.mxu0 0.0
        %511 = vmatpush2.msra.mxu0 0.0
        %512 = vmatprep.subr.mxu0 0.0
        %513 = vmatpush2.msra.mxu0 0.0
        %514 = vmatprep.subr.mxu0 0.0
        %515 = vmatpush2.msra.mxu0 0.0
        %516 = vmatprep.subr.mxu0 0.0
        %517 = vmatpush2.msra.mxu0 0.0
        %518 = vmatprep.subr.mxu0 0.0
        %519 = vmatpush2.msra.mxu0 0.0
        %520 = vmatprep.subr.mxu0 0.0
        %521 = vmatpush2.msra.mxu0 0.0
        %522 = vmatprep.subr.mxu0 0.0
        %523 = vmatpush2.msra.mxu0 0.0
        %524 = vmatprep.subr.mxu0 0.0
        %525 = vmatpush2.msra.mxu0 0.0
        %526 = vmatprep.subr.mxu0 0.0
        %527 = vmatpush2.msra.mxu0 0.0
        %528 = vmatprep.subr.mxu0 0.0
        %529 = vmatpush2.msra.mxu0 0.0
        %530 = vmatprep.subr.mxu0 0.0
        %531 = vmatpush2.msra.mxu0 0.0
        %532 = vmatprep.subr.mxu0 0.0
        %533 = vmatpush2.msra.mxu0 0.0
        %534 = vmatprep.subr.mxu0 0.0
        %535 = vmatpush2.msra.mxu0 0.0
        %536 = vmatprep.subr.mxu0 0.0
        %537 = vmatpush2.msra.mxu0 0.0
        %538 = vmatprep.mubr.f32.mxu0 0.0
        %539 = vmatmul.mubr.f32.gmra.mxu0 %v448
        %v540 = vpop.f32.mrf.mxu0
        %v541 = vadd.f32 %v472, %v540
        %v542 = vpop.f32.mrf.mxu0
        %543 = vmatprep.mubr.f32.mxu0 0.0
        %544 = vmatmul.mubr.f32.gmra.mxu0 %v449
        %v545 = vpop.f32.mrf.mxu0
        %v546 = vadd.f32 %v472, %v545
        %v547 = vpop.f32.mrf.mxu0
        %548 = vmatprep.mubr.f32.mxu0 0.0
        %549 = vmatmul.mubr.f32.gmra.mxu0 %v450
        %v550 = vpop.f32.mrf.mxu0
        %v551 = vadd.f32 %v472, %v550
        %v552 = vpop.f32.mrf.mxu0
        %553 = vdwg.mxu0
        %v554 = vtanh.pop %v541
        %v555 = vtanh.pop %v546
        %v556 = vtanh.pop %v551
        %v557 = vld [vmem:[#allocation7] sm:$0xff]
        %v558 = vld [vmem:[#allocation7 + $0x8] sm:$0xff]
        %v559 = vld [vmem:[#allocation7 + $0x10] sm:$0xff]
        %v560 = vld [vmem:[#allocation7 + $0x18] sm:$0xff]
        %v561 = vld [vmem:[#allocation7 + $0x20] sm:$0xff]
        %v562 = vld [vmem:[#allocation7 + $0x28] sm:$0xff]
        %v563 = vld [vmem:[#allocation7 + $0x30] sm:$0xff]
        %v564 = vld [vmem:[#allocation7 + $0x38] sm:$0xff]
        %v565 = vld [vmem:[#allocation7 + $0x40] sm:$0xff]
        %v566 = vld [vmem:[#allocation7 + $0x48] sm:$0xff]
        %v567 = vld [vmem:[#allocation7 + $0x50] sm:$0xff]
        %v568 = vld [vmem:[#allocation7 + $0x58] sm:$0xff]
        %v569 = vld [vmem:[#allocation7 + $0x60] sm:$0xff]
        %v570 = vld [vmem:[#allocation7 + $0x68] sm:$0xff]
        %v571 = vld [vmem:[#allocation7 + $0x70] sm:$0xff]
        %v572 = vld [vmem:[#allocation7 + $0x78] sm:$0xff]
        %v573 = vld [vmem:[%s4] sm:$0x1]
        %v575 = vlaneseq
        %v576 = vshrl.u32 %v575, 7
        %v577 = vsub.s32 0, %v576
        %v578 = vrot.slane %v573, %v577
        %580 = vmatprep.subr.mxu0 0.0
        %581 = vmatpush1.msra.mxu0 %v572
        %582 = vmatprep.subr.mxu0 0.0
        %583 = vmatpush1.msra.mxu0 %v571
        %584 = vmatprep.subr.mxu0 0.0
        %585 = vmatpush1.msra.mxu0 %v570
        %586 = vmatprep.subr.mxu0 0.0
        %587 = vmatpush1.msra.mxu0 %v569
        %588 = vmatprep.subr.mxu0 0.0
        %589 = vmatpush1.msra.mxu0 %v568
        %590 = vmatprep.subr.mxu0 0.0
        %591 = vmatpush1.msra.mxu0 %v567
        %592 = vmatprep.subr.mxu0 0.0
        %593 = vmatpush1.msra.mxu0 %v566
        %594 = vmatprep.subr.mxu0 0.0
        %595 = vmatpush1.msra.mxu0 %v565
        %596 = vmatprep.subr.mxu0 0.0
        %597 = vmatpush1.msra.mxu0 %v564
        %598 = vmatprep.subr.mxu0 0.0
        %599 = vmatpush1.msra.mxu0 %v563
        %600 = vmatprep.subr.mxu0 0.0
        %601 = vmatpush1.msra.mxu0 %v562
        %602 = vmatprep.subr.mxu0 0.0
        %603 = vmatpush1.msra.mxu0 %v561
        %604 = vmatprep.subr.mxu0 0.0
        %605 = vmatpush1.msra.mxu0 %v560
        %606 = vmatprep.subr.mxu0 0.0
        %607 = vmatpush1.msra.mxu0 %v559
        %608 = vmatprep.subr.mxu0 0.0
        %609 = vmatpush1.msra.mxu0 %v558
        %610 = vmatprep.subr.mxu0 0.0
        %611 = vmatpush1.msra.mxu0 %v557
        %612 = vmatprep.subr.mxu0 0.0
        %613 = vmatpush2.msra.mxu0 0.0
        %614 = vmatprep.subr.mxu0 0.0
        %615 = vmatpush2.msra.mxu0 0.0
        %616 = vmatprep.subr.mxu0 0.0
        %617 = vmatpush2.msra.mxu0 0.0
        %618 = vmatprep.subr.mxu0 0.0
        %619 = vmatpush2.msra.mxu0 0.0
        %620 = vmatprep.subr.mxu0 0.0
        %621 = vmatpush2.msra.mxu0 0.0
        %622 = vmatprep.subr.mxu0 0.0
        %623 = vmatpush2.msra.mxu0 0.0
        %624 = vmatprep.subr.mxu0 0.0
        %625 = vmatpush2.msra.mxu0 0.0
        %626 = vmatprep.subr.mxu0 0.0
        %627 = vmatpush2.msra.mxu0 0.0
        %628 = vmatprep.subr.mxu0 0.0
        %629 = vmatpush2.msra.mxu0 0.0
        %630 = vmatprep.subr.mxu0 0.0
        %631 = vmatpush2.msra.mxu0 0.0
        %632 = vmatprep.subr.mxu0 0.0
        %633 = vmatpush2.msra.mxu0 0.0
        %634 = vmatprep.subr.mxu0 0.0
        %635 = vmatpush2.msra.mxu0 0.0
        %636 = vmatprep.subr.mxu0 0.0
        %637 = vmatpush2.msra.mxu0 0.0
        %638 = vmatprep.subr.mxu0 0.0
        %639 = vmatpush2.msra.mxu0 0.0
        %640 = vmatprep.subr.mxu0 0.0
        %641 = vmatpush2.msra.mxu0 0.0
        %642 = vmatprep.subr.mxu0 0.0
        %643 = vmatpush2.msra.mxu0 0.0
        %644 = vmatprep.mubr.f32.mxu0 0.0
        %645 = vmatmul.mubr.f32.gmra.mxu0 %v554
        %v646 = vpop.f32.mrf.mxu0
        %v647 = vadd.f32 %v578, %v646
        %v648 = vpop.f32.mrf.mxu0
        %649 = vmatprep.mubr.f32.mxu0 0.0
        %650 = vmatmul.mubr.f32.gmra.mxu0 %v555
        %v651 = vpop.f32.mrf.mxu0
        %v652 = vadd.f32 %v578, %v651
        %v653 = vpop.f32.mrf.mxu0
        %654 = vmatprep.mubr.f32.mxu0 0.0
        %655 = vmatmul.mubr.f32.gmra.mxu0 %v556
        %v656 = vpop.f32.mrf.mxu0
        %v657 = vadd.f32 %v578, %v656
        %v658 = vpop.f32.mrf.mxu0
        %659 = vdwg.mxu0
        %v660 = vmax.f32 %v647, 0.0
        %v661 = vmax.f32 %v652, 0.0
        %v662 = vmax.f32 %v657, 0.0
        %v663 = vld [vmem:[#allocation8] sm:$0xff]
        %v664 = vld [vmem:[#allocation8 + $0x8] sm:$0xff]
        %v665 = vld [vmem:[#allocation8 + $0x10] sm:$0xff]
        %v666 = vld [vmem:[#allocation8 + $0x18] sm:$0xff]
        %v667 = vld [vmem:[#allocation8 + $0x20] sm:$0xff]
        %v668 = vld [vmem:[#allocation8 + $0x28] sm:$0xff]
        %v669 = vld [vmem:[#allocation8 + $0x30] sm:$0xff]
        %v670 = vld [vmem:[#allocation8 + $0x38] sm:$0xff]
        %v671 = vld [vmem:[#allocation8 + $0x40] sm:$0xff]
        %v672 = vld [vmem:[#allocation8 + $0x48] sm:$0xff]
        %v673 = vld [vmem:[#allocation8 + $0x50] sm:$0xff]
        %v674 = vld [vmem:[#allocation8 + $0x58] sm:$0xff]
        %v675 = vld [vmem:[#allocation8 + $0x60] sm:$0xff]
        %v676 = vld [vmem:[#allocation8 + $0x68] sm:$0xff]
        %v677 = vld [vmem:[#allocation8 + $0x70] sm:$0xff]
        %v678 = vld [vmem:[#allocation8 + $0x78] sm:$0xff]
        %v679 = vld [vmem:[%s6] sm:$0x1]
        %v681 = vlaneseq
        %v682 = vshrl.u32 %v681, 7
        %v683 = vsub.s32 0, %v682
        %v684 = vrot.slane %v679, %v683
        %686 = vmatprep.subr.mxu0 0.0
        %687 = vmatpush1.msra.mxu0 %v678
        %688 = vmatprep.subr.mxu0 0.0
        %689 = vmatpush1.msra.mxu0 %v677
        %690 = vmatprep.subr.mxu0 0.0
        %691 = vmatpush1.msra.mxu0 %v676
        %692 = vmatprep.subr.mxu0 0.0
        %693 = vmatpush1.msra.mxu0 %v675
        %694 = vmatprep.subr.mxu0 0.0
        %695 = vmatpush1.msra.mxu0 %v674
        %696 = vmatprep.subr.mxu0 0.0
        %697 = vmatpush1.msra.mxu0 %v673
        %698 = vmatprep.subr.mxu0 0.0
        %699 = vmatpush1.msra.mxu0 %v672
        %700 = vmatprep.subr.mxu0 0.0
        %701 = vmatpush1.msra.mxu0 %v671
        %702 = vmatprep.subr.mxu0 0.0
        %703 = vmatpush1.msra.mxu0 %v670
        %704 = vmatprep.subr.mxu0 0.0
        %705 = vmatpush1.msra.mxu0 %v669
        %706 = vmatprep.subr.mxu0 0.0
        %707 = vmatpush1.msra.mxu0 %v668
        %708 = vmatprep.subr.mxu0 0.0
        %709 = vmatpush1.msra.mxu0 %v667
        %710 = vmatprep.subr.mxu0 0.0
        %711 = vmatpush1.msra.mxu0 %v666
        %712 = vmatprep.subr.mxu0 0.0
        %713 = vmatpush1.msra.mxu0 %v665
        %714 = vmatprep.subr.mxu0 0.0
        %715 = vmatpush1.msra.mxu0 %v664
        %716 = vmatprep.subr.mxu0 0.0
        %717 = vmatpush1.msra.mxu0 %v663
        %718 = vmatprep.subr.mxu0 0.0
        %719 = vmatpush2.msra.mxu0 0.0
        %720 = vmatprep.subr.mxu0 0.0
        %721 = vmatpush2.msra.mxu0 0.0
        %722 = vmatprep.subr.mxu0 0.0
        %723 = vmatpush2.msra.mxu0 0.0
        %724 = vmatprep.subr.mxu0 0.0
        %725 = vmatpush2.msra.mxu0 0.0
        %726 = vmatprep.subr.mxu0 0.0
        %727 = vmatpush2.msra.mxu0 0.0
        %728 = vmatprep.subr.mxu0 0.0
        %729 = vmatpush2.msra.mxu0 0.0
        %730 = vmatprep.subr.mxu0 0.0
        %731 = vmatpush2.msra.mxu0 0.0
        %732 = vmatprep.subr.mxu0 0.0
        %733 = vmatpush2.msra.mxu0 0.0
        %734 = vmatprep.subr.mxu0 0.0
        %735 = vmatpush2.msra.mxu0 0.0
        %736 = vmatprep.subr.mxu0 0.0
        %737 = vmatpush2.msra.mxu0 0.0
        %738 = vmatprep.subr.mxu0 0.0
        %739 = vmatpush2.msra.mxu0 0.0
        %740 = vmatprep.subr.mxu0 0.0
        %741 = vmatpush2.msra.mxu0 0.0
        %742 = vmatprep.subr.mxu0 0.0
        %743 = vmatpush2.msra.mxu0 0.0
        %744 = vmatprep.subr.mxu0 0.0
        %745 = vmatpush2.msra.mxu0 0.0
        %746 = vmatprep.subr.mxu0 0.0
        %747 = vmatpush2.msra.mxu0 0.0
        %748 = vmatprep.subr.mxu0 0.0
        %749 = vmatpush2.msra.mxu0 0.0
        %750 = vmatprep.mubr.f32.mxu0 0.0
        %751 = vmatmul.mubr.f32.gmra.mxu0 %v660
        %v752 = vpop.f32.mrf.mxu0
        %v753 = vadd.f32 %v684, %v752
        %v754 = vpop.f32.mrf.mxu0
        %755 = vmatprep.mubr.f32.mxu0 0.0
        %756 = vmatmul.mubr.f32.gmra.mxu0 %v661
        %v757 = vpop.f32.mrf.mxu0
        %v758 = vadd.f32 %v684, %v757
        %v759 = vpop.f32.mrf.mxu0
        %760 = vmatprep.mubr.f32.mxu0 0.0
        %761 = vmatmul.mubr.f32.gmra.mxu0 %v662
        %v762 = vpop.f32.mrf.mxu0
        %v763 = vadd.f32 %v684, %v762
        %v764 = vpop.f32.mrf.mxu0
        %765 = vdwg.mxu0
        %v766 = vmax.f32 %v753, 0.0
        %v767 = vmax.f32 %v758, 0.0
        %v768 = vmax.f32 %v763, 0.0
        %v769 = vld [vmem:[#allocation10] sm:$0xff]
        %v770 = vld [vmem:[#allocation10 + $0x8] sm:$0xff]
        %v771 = vld [vmem:[#allocation10 + $0x10] sm:$0xff]
        %v772 = vld [vmem:[#allocation10 + $0x18] sm:$0xff]
        %v773 = vld [vmem:[#allocation10 + $0x20] sm:$0xff]
        %v774 = vld [vmem:[#allocation10 + $0x28] sm:$0xff]
        %v775 = vld [vmem:[#allocation10 + $0x30] sm:$0xff]
        %v776 = vld [vmem:[#allocation10 + $0x38] sm:$0xff]
        %v777 = vld [vmem:[#allocation10 + $0x40] sm:$0xff]
        %v778 = vld [vmem:[#allocation10 + $0x48] sm:$0xff]
        %v779 = vld [vmem:[#allocation10 + $0x50] sm:$0xff]
        %v780 = vld [vmem:[#allocation10 + $0x58] sm:$0xff]
        %v781 = vld [vmem:[#allocation10 + $0x60] sm:$0xff]
        %v782 = vld [vmem:[#allocation10 + $0x68] sm:$0xff]
        %v783 = vld [vmem:[#allocation10 + $0x70] sm:$0xff]
        %v784 = vld [vmem:[#allocation10 + $0x78] sm:$0xff]
        %v785 = vld [vmem:[%s8] sm:$0x1]
        %v787 = vlaneseq
        %v788 = vshrl.u32 %v787, 7
        %v789 = vsub.s32 0, %v788
        %v790 = vrot.slane %v785, %v789
        %792 = vmatprep.subr.mxu0 0.0
        %793 = vmatpush1.msra.mxu0 %v784
        %794 = vmatprep.subr.mxu0 0.0
        %795 = vmatpush1.msra.mxu0 %v783
        %796 = vmatprep.subr.mxu0 0.0
        %797 = vmatpush1.msra.mxu0 %v782
        %798 = vmatprep.subr.mxu0 0.0
        %799 = vmatpush1.msra.mxu0 %v781
        %800 = vmatprep.subr.mxu0 0.0
        %801 = vmatpush1.msra.mxu0 %v780
        %802 = vmatprep.subr.mxu0 0.0
        %803 = vmatpush1.msra.mxu0 %v779
        %804 = vmatprep.subr.mxu0 0.0
        %805 = vmatpush1.msra.mxu0 %v778
        %806 = vmatprep.subr.mxu0 0.0
        %807 = vmatpush1.msra.mxu0 %v777
        %808 = vmatprep.subr.mxu0 0.0
        %809 = vmatpush1.msra.mxu0 %v776
        %810 = vmatprep.subr.mxu0 0.0
        %811 = vmatpush1.msra.mxu0 %v775
        %812 = vmatprep.subr.mxu0 0.0
        %813 = vmatpush1.msra.mxu0 %v774
        %814 = vmatprep.subr.mxu0 0.0
        %815 = vmatpush1.msra.mxu0 %v773
        %816 = vmatprep.subr.mxu0 0.0
        %817 = vmatpush1.msra.mxu0 %v772
        %818 = vmatprep.subr.mxu0 0.0
        %819 = vmatpush1.msra.mxu0 %v771
        %820 = vmatprep.subr.mxu0 0.0
        %821 = vmatpush1.msra.mxu0 %v770
        %822 = vmatprep.subr.mxu0 0.0
        %823 = vmatpush1.msra.mxu0 %v769
        %824 = vmatprep.subr.mxu0 0.0
        %825 = vmatpush2.msra.mxu0 0.0
        %826 = vmatprep.subr.mxu0 0.0
        %827 = vmatpush2.msra.mxu0 0.0
        %828 = vmatprep.subr.mxu0 0.0
        %829 = vmatpush2.msra.mxu0 0.0
        %830 = vmatprep.subr.mxu0 0.0
        %831 = vmatpush2.msra.mxu0 0.0
        %832 = vmatprep.subr.mxu0 0.0
        %833 = vmatpush2.msra.mxu0 0.0
        %834 = vmatprep.subr.mxu0 0.0
        %835 = vmatpush2.msra.mxu0 0.0
        %836 = vmatprep.subr.mxu0 0.0
        %837 = vmatpush2.msra.mxu0 0.0
        %838 = vmatprep.subr.mxu0 0.0
        %839 = vmatpush2.msra.mxu0 0.0
        %840 = vmatprep.subr.mxu0 0.0
        %841 = vmatpush2.msra.mxu0 0.0
        %842 = vmatprep.subr.mxu0 0.0
        %843 = vmatpush2.msra.mxu0 0.0
        %844 = vmatprep.subr.mxu0 0.0
        %845 = vmatpush2.msra.mxu0 0.0
        %846 = vmatprep.subr.mxu0 0.0
        %847 = vmatpush2.msra.mxu0 0.0
        %848 = vmatprep.subr.mxu0 0.0
        %849 = vmatpush2.msra.mxu0 0.0
        %850 = vmatprep.subr.mxu0 0.0
        %851 = vmatpush2.msra.mxu0 0.0
        %852 = vmatprep.subr.mxu0 0.0
        %853 = vmatpush2.msra.mxu0 0.0
        %854 = vmatprep.subr.mxu0 0.0
        %855 = vmatpush2.msra.mxu0 0.0
        %856 = vmatprep.mubr.f32.mxu0 0.0
        %857 = vmatmul.mubr.f32.gmra.mxu0 %v766
        %v858 = vpop.f32.mrf.mxu0
        %v859 = vadd.f32 %v790, %v858
        %v860 = vpop.f32.mrf.mxu0
        %861 = vmatprep.mubr.f32.mxu0 0.0
        %862 = vmatmul.mubr.f32.gmra.mxu0 %v767
        %v863 = vpop.f32.mrf.mxu0
        %v864 = vadd.f32 %v790, %v863
        %v865 = vpop.f32.mrf.mxu0
        %866 = vmatprep.mubr.f32.mxu0 0.0
        %867 = vmatmul.mubr.f32.gmra.mxu0 %v768
        %v868 = vpop.f32.mrf.mxu0
        %v869 = vadd.f32 %v790, %v868
        %v870 = vpop.f32.mrf.mxu0
        %871 = vdwg.mxu0
        %v872 = vsub.f32 %v859, %v448
        %v873 = vsub.f32 %v864, %v449
        %v874 = vsub.f32 %v869, %v450
        %v875 = vmul.f32 %v872, %v872
        %v876 = vmul.f32 %v873, %v873
        %v877 = vmul.f32 %v874, %v874
        %s878 = smul.u32 %s33, 24
        %v879 = vlaneseq
        %v880 = vshrl.u32 %v879, 7
        %v881 = vadd.s32 %v880, 8
        %v882 = vadd.s32 %v880, 16
        %v883 = vstv %s878
        %v884 = vadd.s32 %v883, %v880
        %v885 = vadd.s32 %v883, %v881
        %v886 = vadd.s32 %v883, %v882
        %vm887 = vcmp.lt.s32.totalorder %v884, 40
        %vm888 = vcmp.lt.s32.totalorder %v885, 40
        %vm889 = vcmp.lt.s32.totalorder %v886, 40
        %v890 = vsel %vm887, 1, 0
        %v891 = vsel %vm888, 1, 0
        %v892 = vsel %vm889, 1, 0
        %vm893 = vcmp.eq.s32.totalorder %v890, 1
        %vm894 = vcmp.eq.s32.totalorder %v891, 1
        %vm895 = vcmp.eq.s32.totalorder %v892, 1
        %v896 = vsel %vm893, %v875, 0.0
        %v897 = vsel %vm894, %v876, 0.0
        %v898 = vsel %vm895, %v877, 0.0
        %899 = vst [vmem:[%s439] sm:$0xff] %v660
        %900 = vst [vmem:[%s439 + $0x8] sm:$0xff] %v661
        %901 = vst [vmem:[%s439 + $0x10] sm:$0xff] %v662
        %v902 = vadd.f32 %v896, %v897
        %v903 = vadd.f32 %v902, %v898
        %v904 = vrot.slane %v903, 4
        %v905 = vadd.f32 %v903, %v904
        %v906 = vrot.slane %v905, 2
        %v907 = vadd.f32 %v905, %v906
        %v908 = vrot.slane %v907, 1
        %v909 = vadd.f32 %v907, %v908
        %910 = vst [vmem:[%s445] sm:$0x1] %v909
        %s911 = sand.u32 %s235, 1
        %s912 = scalar_lea.sflag [#allocation4], %s911
        %s913 = sand.u32 %s235, 1
        %s914 = smul.addr %s913, 24
        %s915 = scalar_lea.vmem [#allocation11], %s914
        %s916 = sand.u32 %s261, 1
        %s917 = scalar_lea.sflag [#allocation13], %s916
        %s918 = sand.u32 %s261, 1
        %s919 = scalar_lea.vmem [#allocation12], %s918
        // Predicated region
        $region77: #{tpu_custom_call.1} parent=55 // pred_check
          %p920 = pneg %p245
        $region78: #{tpu_custom_call.1} parent=55 // pred_check_branch
          %922 = sbr.rel (%p920) target = $region80
        $region79: #{tpu_custom_call.1} parent=55 // pred_region
          %s923 = smul.u32 3, %s33
          %s925 = ssub.s32 384, 384
          %926 = vsyncadd %s912, %s925
          %s927 = smul.addr %s923, 128
          %s928 = scalar_lea.hbm %s9, %s927
          %s929 = sshll.u32 %s915, 4
          %s930 = int_to_ptr.vmem [resolvable:$true] %s929
          %935 = dma.vmem_to_hbm [thread:$0]  %s930, 384, %s928, %s912, 128, 128, 8
        $region80: #{tpu_custom_call.1} parent=55 // pred_fallthru
          _
        // Predicated region
        $region81: #{tpu_custom_call.1} parent=55 // pred_check
          %p936 = pneg %p271
        $region82: #{tpu_custom_call.1} parent=55 // pred_check_branch
          %938 = sbr.rel (%p936) target = $region84
        $region83: #{tpu_custom_call.1} parent=55 // pred_region
          %s940 = ssub.s32 16, 16
          %941 = vsyncadd %s917, %s940
          %s942 = smul.addr %s33, 16
          %s943 = scalar_lea.hbm %s10, %s942
          %s945 = sshll.u32 %s919, 4
          %s946 = int_to_ptr.vmem [resolvable:$true] %s945
          %948 = dma.vmem_to_hbm [thread:$0]  %s946, 16, %s943, %s917
        $region84: #{tpu_custom_call.1} parent=55 // pred_fallthru
          _
      $region56: #{tpu_custom_call.1} parent=5 // pred_fallthru
        _
      %p949 = scmp.le.s32.totalorder 2, %s28
      // Predicated region
      $region85: #{tpu_custom_call.1} parent=5 // pred_check
        %p950 = pneg %p949
      $region86: #{tpu_custom_call.1} parent=5 // pred_check_branch
        %952 = sbr.rel (%p950) target = $region88
      $region87: #{tpu_custom_call.1} parent=5 // pred_region
        %s953 = ssub.s32 %s28, 2
        // Predicated region
        $region89: #{tpu_custom_call.1} parent=87 // pred_check
          %p954 = pneg %p251
        $region90: #{tpu_custom_call.1} parent=87 // pred_check_branch
          %956 = sbr.rel (%p954) target = $region92
        $region91: #{tpu_custom_call.1} parent=87 // pred_region
          %s957 = sand.u32 %s236, 1
          %s958 = scalar_lea.sflag [#allocation4], %s957
          %s959 = sand.u32 %s236, 1
          %s960 = smul.addr %s959, 24
          %s961 = scalar_lea.vmem [#allocation11], %s960
          %962 = dma.done %s958, 384
        $region92: #{tpu_custom_call.1} parent=87 // pred_fallthru
          _
        // Predicated region
        $region93: #{tpu_custom_call.1} parent=87 // pred_check
          %p963 = pneg %p277
        $region94: #{tpu_custom_call.1} parent=87 // pred_check_branch
          %965 = sbr.rel (%p963) target = $region96
        $region95: #{tpu_custom_call.1} parent=87 // pred_region
          %s966 = sand.u32 %s262, 1
          %s967 = scalar_lea.sflag [#allocation13], %s966
          %s968 = sand.u32 %s262, 1
          %s969 = scalar_lea.vmem [#allocation12], %s968
          %970 = dma.done %s967, 16
        $region96: #{tpu_custom_call.1} parent=87 // pred_fallthru
          _
      $region88: #{tpu_custom_call.1} parent=5 // pred_fallthru
        _
    $region6: #{tpu_custom_call.1} parent=1 // loop_footer
      %s32 = sadd.s32 1, %s28
    $region7: #{tpu_custom_call.1} parent=1 // loop_footer_branch
      %27 = sbr.rel target = $region3
    $region8: #{tpu_custom_call.1} parent=1 // loop_exit
      _
    %971 = vsyncpa [#allocation3], 1
    %s972 = scalar_lea.sflag [#allocation3], 1
    %973 = vsyncpa %s972, 1
    %974 = vsyncpa [#allocation6], 1
    %975 = vsyncpa [#allocation9], 1
    %976 = vsyncpa [#allocation4], 1
    %s977 = scalar_lea.sflag [#allocation4], 1
    %978 = vsyncpa %s977, 1
    %979 = vsyncpa [#allocation13], 1
    %s980 = scalar_lea.sflag [#allocation13], 1
    %981 = vsyncpa %s980, 1

</llo_original>
